<compile_context>
chip_gen: v7x
topology: tpu7x:2x2x1
jax: 0.10.0
libtpu: 0.0.40
codegen_flags: <defaults>
</compile_context>

<pallas_src>
import functools

import jax
import jax.numpy as jnp
from jax.experimental import pallas as pl
from jax.experimental.pallas import tpu as pltpu


def _round_up(x, m):
    return ((x + m - 1) // m) * m


def _cdiv(a, b):
    return -(-a // b)


def _vmem_budget_bytes():
    """~75% of per-core VMEM: ~48 MiB on v7x, ~96 MiB on v5e/v6e."""
    cap = 64 * 1024 * 1024          # conservative fallback (safe on every chip)
    try:
        cap = int(pltpu.get_tpu_info().vmem_capacity_bytes)
    except Exception:
        pass
    return (cap * 3) // 4


def _choose_tm(block_m, n_rows, fixed_bytes, per_row_bytes, budget):
    """Row-tile size: multiple of 8, fits the VMEM budget, and leaves >=2 row
    tiles so the 'parallel' axis can be split across v7x's two TensorCores."""
    n8 = _round_up(max(n_rows, 1), 8)
    tm = min(_round_up(max(block_m, 8), 8), n8)
    if n8 > 8:
        tm = min(tm, _round_up(_cdiv(n_rows, 2), 8))
    while tm > 8 and fixed_bytes + tm * per_row_bytes > budget:
        tm = max(8, _round_up(tm // 2, 8))
    return tm


def _gcn_xw_kernel(adj_ref, xw_ref, bmean_ref, out_ref, *scratch, inv_e):
    """feats_first path.  Grid = (row_tiles, E); E innermost (resident acc).

    adj_ref  : (1, TM, N)       adjacency row-tile for edge type e (unpadded N)
    xw_ref   : (1, N, F_out_p)  precomputed features @ weight[e]
    bmean_ref: (1, F_out_p)     mean-over-E bias, added once at finalize
    out_ref  : (TM, F_out_p)    output tile; doubles as f32 accumulator
    scratch  : () if out dtype is f32 else (f32 acc,)
    """
    acc_ref = scratch[0] if scratch else out_ref
    e = pl.program_id(1)

    @pl.when(e == 0)
    def _init():
        acc_ref[...] = jnp.zeros_like(acc_ref)

    acc_ref[...] += jnp.dot(adj_ref[0], xw_ref[0],
                            preferred_element_type=jnp.float32)

    @pl.when(e == pl.num_programs(1) - 1)
    def _finalize():
        out_ref[...] = (acc_ref[...] * inv_e + bmean_ref[...]).astype(out_ref.dtype)


def _gcn_fw_kernel(adj_ref, feat_ref, w_ref, bmean_ref, out_ref, *scratch, inv_e):
    """F_out > F_in path: (adj @ feats) @ weight[e] in-kernel.

    feat_ref : (N, F_in)            constant block, single-buffered
    w_ref    : (E, F_in, F_out_p)   whole weight cached once, indexed by e
    """
    acc_ref = scratch[0] if scratch else out_ref
    e = pl.program_id(1)

    @pl.when(e == 0)
    def _init():
        acc_ref[...] = jnp.zeros_like(acc_ref)

    h = jnp.dot(adj_ref[0], feat_ref[...], preferred_element_type=jnp.float32)
    h = h.astype(feat_ref.dtype)           # bf16 inputs keep the 2nd GEMM at full MXU rate
    acc_ref[...] += jnp.dot(h, w_ref[e], preferred_element_type=jnp.float32)

    @pl.when(e == pl.num_programs(1) - 1)
    def _finalize():
        out_ref[...] = (acc_ref[...] * inv_e + bmean_ref[...]).astype(out_ref.dtype)


@functools.partial(jax.jit, static_argnames=("block_m", "compute_dtype"))
def graph_convolution(features, adjacency, weight, bias=None, *,
                      block_m=512, compute_dtype=None):
    """features: [N, F_in], adjacency: [E, N, N] (or [N, N] -> expanded),
    weight: [E, F_in, F_out], bias: [E, 1, F_out] or None. Returns [N, F_out].

    compute_dtype (e.g. jnp.bfloat16) optionally casts the adjacency stream and
    the intermediate to that dtype (bandwidth saver, small precision cost)."""
    if adjacency.ndim == 2:
        adjacency = adjacency[None]
    E, N, _ = adjacency.shape
    F_in = features.shape[-1]
    F_out = weight.shape[-1]
    out_dtype = features.dtype
    out_isz = jnp.dtype(out_dtype).itemsize

    fout_p = _round_up(F_out, 128)          # lane-dense output (unmasked stores)
    w_p = weight
    if fout_p != F_out:                     # tiny pad, only on weight / bias
        w_p = jnp.pad(weight, ((0, 0), (0, 0), (0, fout_p - F_out)))

    if bias is not None:
        bmean = jnp.mean(bias.astype(jnp.float32), axis=0)       # (1, F_out)
    else:
        bmean = jnp.zeros((1, F_out), jnp.float32)
    if fout_p != F_out:
        bmean = jnp.pad(bmean, ((0, 0), (0, fout_p - F_out)))

    feats_first = F_out <= F_in
    acc_in_out = out_dtype == jnp.float32
    budget = _vmem_budget_bytes()
    acc_extra = 0 if acc_in_out else fout_p * 4

    if feats_first:
        # Review #1: hoist the e-only GEMM out of the row-tile loop.
        xw = jnp.einsum("nf,efo->eno", features, w_p,
                        precision=jax.lax.Precision.HIGHEST).astype(out_dtype)
        adj_k = adjacency
        if compute_dtype is not None:
            adj_k = adj_k.astype(compute_dtype)
            xw = xw.astype(compute_dtype)
        adj_isz = jnp.dtype(adj_k.dtype).itemsize
        xw_isz = jnp.dtype(xw.dtype).itemsize

        fixed = 2 * N * fout_p * xw_isz + 2 * fout_p * 4
        per_row = 2 * N * adj_isz + 2 * fout_p * out_isz + acc_extra
        tm = _choose_tm(block_m, N, fixed, per_row, budget)
        num_m = _cdiv(N, tm)
        n_p = num_m * tm                    # output allocation only; no input pad copy

        kernel = functools.partial(_gcn_xw_kernel, inv_e=1.0 / E)
        in_specs = [
            pl.BlockSpec((1, tm, N), lambda m, e: (e, m, 0)),        # adj rows, unpadded
            pl.BlockSpec((1, N, fout_p), lambda m, e: (e, 0, 0)),    # xw[e]
            pl.BlockSpec((1, fout_p), lambda m, e: (0, 0)),          # mean bias
        ]
        operands = (adj_k, xw, bmean)
        flops = 2 * E * n_p * N * fout_p
        bytes_accessed = (E * N * N * adj_isz                        # adjacency once
                          + num_m * E * N * fout_p * xw_isz          # xw per row tile
                          + fout_p * 4 + n_p * fout_p * out_isz)
    else:
        adj_k, feats_k = adjacency, features
        if compute_dtype is not None:
            adj_k = adj_k.astype(compute_dtype)
            feats_k = feats_k.astype(compute_dtype)
            w_p = w_p.astype(compute_dtype)
        adj_isz = jnp.dtype(adj_k.dtype).itemsize
        f_isz = jnp.dtype(feats_k.dtype).itemsize
        w_isz = jnp.dtype(w_p.dtype).itemsize

        fixed = N * F_in * f_isz + E * F_in * fout_p * w_isz + 2 * fout_p * 4
        per_row = 2 * N * adj_isz + 2 * fout_p * out_isz + acc_extra
        tm = _choose_tm(block_m, N, fixed, per_row, budget)
        num_m = _cdiv(N, tm)
        n_p = num_m * tm

        kernel = functools.partial(_gcn_fw_kernel, inv_e=1.0 / E)
        in_specs = [
            pl.BlockSpec((1, tm, N), lambda m, e: (e, m, 0)),
            # constant-index blocks: DMA'd once, single-buffered (review #3 / #8)
            pl.BlockSpec((N, F_in), lambda m, e: (0, 0),
                         pipeline_mode=pl.Buffered(1)),
            pl.BlockSpec((E, F_in, fout_p), lambda m, e: (0, 0, 0),
                         pipeline_mode=pl.Buffered(1)),
            pl.BlockSpec((1, fout_p), lambda m, e: (0, 0)),
        ]
        operands = (adj_k, feats_k, w_p, bmean)
        flops = 2 * E * n_p * (N * F_in + F_in * fout_p)
        bytes_accessed = (E * N * N * adj_isz + N * F_in * f_isz
                          + E * F_in * fout_p * w_isz
                          + fout_p * 4 + n_p * fout_p * out_isz)

    scratch_shapes = [] if acc_in_out else [pltpu.VMEM((tm, fout_p), jnp.float32)]

    grid_spec = pltpu.PrefetchScalarGridSpec(
        num_scalar_prefetch=0,
        grid=(num_m, E),                    # E innermost -> resident accumulator
        in_specs=in_specs,
        out_specs=pl.BlockSpec((tm, fout_p), lambda m, e: (m, 0)),
        scratch_shapes=scratch_shapes,
    )

    out = pl.pallas_call(
        kernel,
        out_shape=jax.ShapeDtypeStruct((n_p, fout_p), out_dtype),
        grid_spec=grid_spec,
        compiler_params=pltpu.CompilerParams(
            # row tiles split across TensorCores (v7x); E is a reduction
            dimension_semantics=("parallel", "arbitrary"),
            vmem_limit_bytes=int(budget),
        ),
        cost_estimate=pl.CostEstimate(
            flops=int(flops), transcendentals=0,
            bytes_accessed=int(bytes_accessed)),
    )(*operands)

    return out[:N, :F_out]


def _kaiming_uniform(key, shape, fan_in, dtype=jnp.float32):
    # He / kaiming uniform: U(-bound, bound), bound = sqrt(6 / fan_in)
    bound = jnp.sqrt(6.0 / fan_in)
    return jax.random.uniform(key, shape, dtype=dtype, minval=-bound, maxval=bound)


if __name__ == "__main__":
    def reference(features, adjacency, weight, bias):
        ref = jnp.einsum("enm,mf->enf", adjacency, features,
                         precision=jax.lax.Precision.HIGHEST)
        ref = jnp.einsum("enf,efo->eno", ref, weight,
                         precision=jax.lax.Precision.HIGHEST)
        if bias is not None:
            ref = ref + bias
        return jnp.sum(ref, axis=0) / adjacency.shape[0]

    def make_inputs(key, E, N, F_in, F_out):
        k_feat, k_adj, k_w, k_b = jax.random.split(key, 4)
        features = jax.random.normal(k_feat, (N, F_in), dtype=jnp.float32)
        adjacency = jax.random.uniform(k_adj, (E, N, N), dtype=jnp.float32)
        weight = _kaiming_uniform(k_w, (E, F_in, F_out), fan_in=F_in)
        bias = _kaiming_uniform(k_b, (E, 1, F_out), fan_in=1)
        return features, adjacency, weight, bias

    # (a) aligned shapes, f32 (hoisted-xw path, 2 row tiles).
    f1, a1, w1, b1 = make_inputs(jax.random.PRNGKey(0), E=2, N=256, F_in=128, F_out=128)
    out1 = jax.block_until_ready(graph_convolution(f1, a1, w1, b1))
    ref1 = reference(f1, a1, w1, b1)
    assert out1.shape == (256, 128)
    assert jnp.allclose(out1, ref1, atol=5e-3, rtol=5e-3), "mismatch (aligned f32)"

    # (b) ragged rows / non-128 feature dims, no bias; no adjacency pad copy.
    f2, a2, w2, _ = make_inputs(jax.random.PRNGKey(1), E=3, N=200, F_in=96, F_out=64)
    out2 = jax.block_until_ready(graph_convolution(f2, a2, w2, None))
    ref2 = reference(f2, a2, w2, None)
    assert out2.shape == (200, 64)
    assert jnp.allclose(out2, ref2, atol=5e-3, rtol=5e-3), "mismatch (ragged f32)"

    # (c) opt-in bf16 adjacency / intermediate (bandwidth saver, looser tolerance).
    out3 = jax.block_until_ready(
        graph_convolution(f1, a1, w1, b1, compute_dtype=jnp.bfloat16))
    assert jnp.allclose(out3, ref1, atol=0.5, rtol=5e-2), "mismatch (bf16 compute)"

    print("KERNEL_OK")
</pallas_src>

<mosaic_0001>
module attributes {stable_mosaic.version = 11 : i64} {
  func.func @_gcn_xw_kernel(%arg0: i32, %arg1: i32, %arg2: memref<1x128x256xf32, #tpu.memory_space<vmem>>, %arg3: memref<1x256x128xf32, #tpu.memory_space<vmem>>, %arg4: memref<1x128xf32, #tpu.memory_space<vmem>>, %arg5: memref<128x128xf32, #tpu.memory_space<vmem>>) attributes {dimension_semantics = [#tpu.dimension_semantics<parallel>, #tpu.dimension_semantics<arbitrary>], iteration_bounds = array<i64: 2, 2>, scalar_prefetch = 0 : i64, scratch_operands = 0 : i64, tpu.core_type = #tpu.core_type<tc>, window_params = [{transform_indices = @transform_0, window_bounds = array<i64: 1, 128, 256>}, {transform_indices = @transform_1, window_bounds = array<i64: 1, 256, 128>}, {pipeline_mode = #tpu.pipeline_mode<synchronous>, transform_indices = @transform_2, window_bounds = array<i64: 1, 128>}, {transform_indices = @transform_3, window_bounds = array<i64: 128, 128>}]} {
    %c0_i32 = arith.constant 0 : i32
    %0 = arith.cmpi eq, %arg1, %c0_i32 : i32
    %1 = arith.extui %0 : i1 to i32
    %c0_i32_0 = arith.constant 0 : i32
    %2 = arith.cmpi ne, %1, %c0_i32_0 : i32
    scf.if %2 {
      %cst_11 = arith.constant 0.000000e+00 : f32
      %14 = vector.broadcast %cst_11 : f32 to vector<128x128xf32>
      %c0_12 = arith.constant 0 : index
      %c0_13 = arith.constant 0 : index
      %15 = vector.load %arg5[%c0_12, %c0_13] : memref<128x128xf32, #tpu.memory_space<vmem>>, vector<128x128xf32>
      tpu.vector_store %arg5[%c0_12, %c0_13], %14 {strides = array<i32>} : memref<128x128xf32, #tpu.memory_space<vmem>>, vector<128x128xf32>,
    } else {
    }
    %c0 = arith.constant 0 : index
    %c0_1 = arith.constant 0 : index
    %3 = vector.load %arg5[%c0, %c0_1] : memref<128x128xf32, #tpu.memory_space<vmem>>, vector<128x128xf32>
    %c0_2 = arith.constant 0 : index
    %c0_3 = arith.constant 0 : index
    %c0_4 = arith.constant 0 : index
    %4 = vector.load %arg2[%c0_2, %c0_3, %c0_4] : memref<1x128x256xf32, #tpu.memory_space<vmem>>, vector<1x128x256xf32>
    %5 = vector.shape_cast %4 : vector<1x128x256xf32> to vector<128x256xf32>
    %c0_5 = arith.constant 0 : index
    %c0_6 = arith.constant 0 : index
    %c0_7 = arith.constant 0 : index
    %6 = vector.load %arg3[%c0_5, %c0_6, %c0_7] : memref<1x256x128xf32, #tpu.memory_space<vmem>>, vector<1x256x128xf32>
    %7 = vector.shape_cast %6 : vector<1x256x128xf32> to vector<256x128xf32>
    %cst = arith.constant dense<0.000000e+00> : vector<128x128xf32>
    %8 = tpu.matmul %5, %7, %cst {dimension_numbers = #tpu.dot_dimension_numbers<[1], [0], [0], [1], [0, 0, 1, 1], [], []>} : vector<128x256xf32>, vector<256x128xf32>, vector<128x128xf32> -> vector<128x128xf32>
    %9 = arith.addf %3, %8 : vector<128x128xf32>
    %c0_8 = arith.constant 0 : index
    %c0_9 = arith.constant 0 : index
    %10 = vector.load %arg5[%c0_8, %c0_9] : memref<128x128xf32, #tpu.memory_space<vmem>>, vector<128x128xf32>
    tpu.vector_store %arg5[%c0_8, %c0_9], %9 {strides = array<i32>} : memref<128x128xf32, #tpu.memory_space<vmem>>, vector<128x128xf32>,
    %c1_i32 = arith.constant 1 : i32
    %11 = arith.cmpi eq, %arg1, %c1_i32 : i32
    %12 = arith.extui %11 : i1 to i32
    %c0_i32_10 = arith.constant 0 : i32
    %13 = arith.cmpi ne, %12, %c0_i32_10 : i32
    scf.if %13 {
      %c0_11 = arith.constant 0 : index
      %c0_12 = arith.constant 0 : index
      %14 = vector.load %arg5[%c0_11, %c0_12] : memref<128x128xf32, #tpu.memory_space<vmem>>, vector<128x128xf32>
      %cst_13 = arith.constant 5.000000e-01 : f32
      %15 = vector.broadcast %cst_13 : f32 to vector<128x128xf32>
      %16 = arith.mulf %14, %15 : vector<128x128xf32>
      %c0_14 = arith.constant 0 : index
      %c0_15 = arith.constant 0 : index
      %17 = vector.load %arg4[%c0_14, %c0_15] : memref<1x128xf32, #tpu.memory_space<vmem>>, vector<1x128xf32>
      %18 = vector.broadcast %17 : vector<1x128xf32> to vector<128x128xf32>
      %19 = arith.addf %16, %18 : vector<128x128xf32>
      %c0_16 = arith.constant 0 : index
      %c0_17 = arith.constant 0 : index
      %20 = vector.load %arg5[%c0_16, %c0_17] : memref<128x128xf32, #tpu.memory_space<vmem>>, vector<128x128xf32>
      tpu.vector_store %arg5[%c0_16, %c0_17], %19 {strides = array<i32>} : memref<128x128xf32, #tpu.memory_space<vmem>>, vector<128x128xf32>,
    } else {
    }
    return
  }
  func.func @transform_0(%arg0: i32, %arg1: i32) -> (i32, i32, i32) {
    %c0_i32 = arith.constant 0 : i32
    %c0_i32_0 = arith.constant 0 : i32
    return %arg1, %arg0, %c0_i32 : i32, i32, i32
  }
  func.func @transform_1(%arg0: i32, %arg1: i32) -> (i32, i32, i32) {
    %c0_i32 = arith.constant 0 : i32
    %c0_i32_0 = arith.constant 0 : i32
    %c0_i32_1 = arith.constant 0 : i32
    return %arg1, %c0_i32, %c0_i32_0 : i32, i32, i32
  }
  func.func @transform_2(%arg0: i32, %arg1: i32) -> (i32, i32) {
    %c0_i32 = arith.constant 0 : i32
    %c0_i32_0 = arith.constant 0 : i32
    %c0_i32_1 = arith.constant 0 : i32
    return %c0_i32, %c0_i32_0 : i32, i32
  }
  func.func @transform_3(%arg0: i32, %arg1: i32) -> (i32, i32) {
    %c0_i32 = arith.constant 0 : i32
    %c0_i32_0 = arith.constant 0 : i32
    return %arg0, %c0_i32 : i32, i32
  }
}

</mosaic_0001>

<llo_original>
// kernel: graph_convolution.1
$region0: #{graph_convolution.1}
  #allocation0 [shape = 'u32[]', space=smem, size = 0x4, offset = 0x4, fixed_abs, tag = 'smem constant byte address 0x4 - core index']
  #allocation1 [shape = 'u32[144,128]{1,0:T(1,128)}', space=vmem, size = 0x12000, scoped, tag = 'internal scratch']
  %s0 = inlined_call_operand.vmem [shape: f32[2,256,256], index: 0, kind: input, shape index: {}]
  %s1 = inlined_call_operand.vmem [shape: f32[2,256,128], index: 1, kind: input, shape index: {}]
  %s2 = inlined_call_operand.vmem [shape: f32[1,128], index: 2, kind: input, shape index: {}]
  %s3 = inlined_call_operand.hbm [shape: f32[256,128], index: 3, kind: output, shape index: {}]
  %s4 = sld [smem:[#allocation0]]
  $region53: #{graph_convolution.1} parent=0
    _
  %s6 = ssub.s32 1, %s4
  %s7 = scalar_select 0, %s6, %s4
  $region1: #{graph_convolution.1} parent=0
    #allocation2 [shape = 'u8[131072]{0}', space=vmem, size = 0x20000, scoped, tag = 'output window, operand 0']
    #allocation3 [shape = 's32[2]{0}', space=sflag, size = 0x8, scoped, tag = 'scoped memory for graph_convolution.1']
    %8 = vsyncpa [#allocation3], 0
    %s9 = scalar_lea.sflag [#allocation3], 1
    %10 = vsyncpa %s9, 0
    loop: start=0, step=1, limit=6
    $region2: #{graph_convolution.1} parent=1 // loop_pre_header
      _
    $region3: #{graph_convolution.1} parent=1 // loop_header
      %s12 = sphi 0, %s16
      %p13 = scmp.ge.s32.totalorder %s12, 6
      %s19 = sphi 0, %s31
      %s20 = sphi 0, %s27
      %s21 = sphi 0, %s19
      %s22 = sphi 0, %s20
      %s23 = sphi 0, %s21
      %s24 = sphi 0, %s22
      %s36 = sphi 0, %s38
      %s39 = sphi 0, %s36
      %s40 = sphi 0, %s39
      %s56 = sphi 0, %s40
      %s62 = sphi 0, %s64
      %s65 = sphi 0, %s62
      %s66 = sphi 0, %s65
      %s82 = sphi 0, %s66
      %s86 = sphi 0, %s86
      %s88 = sphi 0, %s86
      %s89 = sphi 0, %s88
      %s103 = sphi 0, %s89
      %s109 = sphi 0, %s111
      %s112 = sphi 0, %s109
      %s113 = sphi 0, %s112
      %s129 = sphi 0, %s113
    $region4: #{graph_convolution.1} parent=1 // loop_header_branch
      %15 = sbr.rel (%p13) target = $region8
    $region5: #{graph_convolution.1} parent=1 // loop_body
      %s17 = ssub.s32 %s12, 1
      %s18 = ssub.s32 %s12, 2
      %s25 = sadd.s32 1, %s20
      %p26 = scmp.ge.s32.totalorder %s25, 2
      %s27 = scalar_select %p26, 0, %s25
      %s28 = sadd.s32 1, %s19
      %s29 = scalar_select %p26, %s28, %s19
      %p30 = scmp.ge.s32.totalorder %s29, 2
      %s31 = scalar_select %p30, 0, %s29
      %s32 = ssub.s32 %s20, %s27
      %s33 = ssub.s32 %s19, %s31
      %s34 = sor.u32 %s32, %s33
      %p35 = scmp.eq.s32.totalorder %s34, 0
      %s37 = sadd.s32 %s36, 1
      %s38 = scalar_select %p35, %s36, %s37
      %p41 = pneg %p35
      %p42 = scmp.eq.s32.totalorder %s12, 3
      %p43 = por %p41, %p42
      %p44 = scmp.ne.s32.totalorder %s36, %s39
      %p45 = scmp.eq.s32.totalorder %s12, 0
      %p46 = por %p44, %p45
      %p47 = scmp.ne.s32.totalorder %s36, %s39
      %p48 = scmp.eq.s32.totalorder %s17, 3
      %p49 = por %p47, %p48
      %p50 = scmp.ne.s32.totalorder %s39, %s40
      %p51 = scmp.eq.s32.totalorder %s17, 0
      %p52 = por %p50, %p51
      %p53 = scmp.ne.s32.totalorder %s39, %s40
      %p54 = scmp.eq.s32.totalorder %s18, 3
      %p55 = por %p53, %p54
      %p57 = scmp.ne.s32.totalorder %s40, %s56
      %p58 = scmp.eq.s32.totalorder %s18, 0
      %p59 = por %p57, %p58
      %s60 = ssub.s32 %s20, %s27
      %p61 = scmp.eq.s32.totalorder %s60, 0
      %s63 = sadd.s32 %s62, 1
      %s64 = scalar_select %p61, %s62, %s63
      %p67 = pneg %p61
      %p68 = scmp.eq.s32.totalorder %s12, 3
      %p69 = por %p67, %p68
      %p70 = scmp.ne.s32.totalorder %s62, %s65
      %p71 = scmp.eq.s32.totalorder %s12, 0
      %p72 = por %p70, %p71
      %p73 = scmp.ne.s32.totalorder %s62, %s65
      %p74 = scmp.eq.s32.totalorder %s17, 3
      %p75 = por %p73, %p74
      %p76 = scmp.ne.s32.totalorder %s65, %s66
      %p77 = scmp.eq.s32.totalorder %s17, 0
      %p78 = por %p76, %p77
      %p79 = scmp.ne.s32.totalorder %s65, %s66
      %p80 = scmp.eq.s32.totalorder %s18, 3
      %p81 = por %p79, %p80
      %p83 = scmp.ne.s32.totalorder %s66, %s82
      %p84 = scmp.eq.s32.totalorder %s18, 0
      %p85 = por %p83, %p84
      %s87 = sadd.s32 %s86, 1
      %p90 = scmp.eq.s32.totalorder %s12, 3
      %p91 = scmp.ne.s32.totalorder %s86, %s88
      %p92 = scmp.eq.s32.totalorder %s12, 0
      %p93 = por %p91, %p92
      %p94 = scmp.ne.s32.totalorder %s86, %s88
      %p95 = scmp.eq.s32.totalorder %s17, 3
      %p96 = por %p94, %p95
      %p97 = scmp.ne.s32.totalorder %s88, %s89
      %p98 = scmp.eq.s32.totalorder %s17, 0
      %p99 = por %p97, %p98
      %p100 = scmp.ne.s32.totalorder %s88, %s89
      %p101 = scmp.eq.s32.totalorder %s18, 3
      %p102 = por %p100, %p101
      %p104 = scmp.ne.s32.totalorder %s89, %s103
      %p105 = scmp.eq.s32.totalorder %s18, 0
      %p106 = por %p104, %p105
      %s107 = ssub.s32 %s19, %s31
      %p108 = scmp.eq.s32.totalorder %s107, 0
      %s110 = sadd.s32 %s109, 1
      %s111 = scalar_select %p108, %s109, %s110
      %p114 = pneg %p108
      %p115 = scmp.eq.s32.totalorder %s12, 3
      %p116 = por %p114, %p115
      %p117 = scmp.ne.s32.totalorder %s109, %s112
      %p118 = scmp.eq.s32.totalorder %s12, 0
      %p119 = por %p117, %p118
      %p120 = scmp.ne.s32.totalorder %s109, %s112
      %p121 = scmp.eq.s32.totalorder %s17, 3
      %p122 = por %p120, %p121
      %p123 = scmp.ne.s32.totalorder %s112, %s113
      %p124 = scmp.eq.s32.totalorder %s17, 0
      %p125 = por %p123, %p124
      %p126 = scmp.ne.s32.totalorder %s112, %s113
      %p127 = scmp.eq.s32.totalorder %s18, 3
      %p128 = por %p126, %p127
      %p130 = scmp.ne.s32.totalorder %s113, %s129
      %p131 = scmp.eq.s32.totalorder %s18, 0
      %p132 = por %p130, %p131
      %p133 = scmp.le.s32.totalorder 1, %s12
      %p134 = scmp.lt.s32.totalorder %s12, 5
      %p135 = pnand %p133, %p134
      %p136 = pneg %p135
      // Predicated region
      $region9: #{graph_convolution.1} parent=5 // pred_check
        _
      $region10: #{graph_convolution.1} parent=5 // pred_check_branch
        %138 = sbr.rel (%p135) target = $region12
      $region11: #{graph_convolution.1} parent=5 // pred_region
        %s139 = ssub.s32 %s12, 1
        // Predicated region
        $region13: #{graph_convolution.1} parent=11 // pred_check
          %p140 = pneg %p99
        $region14: #{graph_convolution.1} parent=11 // pred_check_branch
          %142 = sbr.rel (%p140) target = $region16
        $region15: #{graph_convolution.1} parent=11 // pred_region
          _
        $region16: #{graph_convolution.1} parent=11 // pred_fallthru
          _
      $region12: #{graph_convolution.1} parent=5 // pred_fallthru
        _
      %p143 = scmp.lt.s32.totalorder %s12, 4
      // Predicated region
      $region17: #{graph_convolution.1} parent=5 // pred_check
        %p144 = pneg %p143
      $region18: #{graph_convolution.1} parent=5 // pred_check_branch
        %146 = sbr.rel (%p144) target = $region20
      $region19: #{graph_convolution.1} parent=5 // pred_region
        // Predicated region
        $region21: #{graph_convolution.1} parent=19 // pred_check
          %p147 = pneg %p46
        $region22: #{graph_convolution.1} parent=19 // pred_check_branch
          %149 = sbr.rel (%p147) target = $region24
        $region23: #{graph_convolution.1} parent=19 // pred_region
          %s150 = smul.u32 16, %s19
          %p151 = scmp.lt.s32.totalorder %s20, 1
          %s152 = scalar_select %p151, %s20, 1
          %p153 = scmp.lt.s32.totalorder %s150, 31
          %s154 = scalar_select %p153, %s150, 31
          %s155 = smul.addr %s154, 2
          %s156 = smul.addr %s152, 64
          %s157 = sadd.s32 %s155, %s156
          %s158 = smul.addr %s157, 8
          %s159 = scalar_lea.vmem %s0, %s158
          %s160 = smul.u32 16, %s19
        $region24: #{graph_convolution.1} parent=19 // pred_fallthru
          _
        // Predicated region
        $region25: #{graph_convolution.1} parent=19 // pred_check
          %p161 = pneg %p72
        $region26: #{graph_convolution.1} parent=19 // pred_check_branch
          %163 = sbr.rel (%p161) target = $region28
        $region27: #{graph_convolution.1} parent=19 // pred_region
          %p164 = scmp.lt.s32.totalorder %s20, 1
          %s165 = scalar_select %p164, %s20, 1
          %s166 = smul.addr %s165, 32
          %s167 = smul.addr %s166, 8
          %s168 = scalar_lea.vmem %s1, %s167
        $region28: #{graph_convolution.1} parent=19 // pred_fallthru
          _
      $region20: #{graph_convolution.1} parent=5 // pred_fallthru
        _
      %p169 = scmp.le.s32.totalorder 1, %s12
      %p170 = scmp.lt.s32.totalorder %s12, 5
      %p171 = pnand %p169, %p170
      %p172 = pneg %p171
      // Predicated region
      $region29: #{graph_convolution.1} parent=5 // pred_check
        _
      $region30: #{graph_convolution.1} parent=5 // pred_check_branch
        %174 = sbr.rel (%p171) target = $region32
      $region31: #{graph_convolution.1} parent=5 // pred_region
        %s175 = ssub.s32 %s12, 1
        %s176 = smul.u32 16, %s21
        %p177 = scmp.lt.s32.totalorder %s22, 1
        %s178 = scalar_select %p177, %s22, 1
        %p179 = scmp.lt.s32.totalorder %s176, 31
        %s180 = scalar_select %p179, %s176, 31
        %s181 = smul.addr %s180, 2
        %s182 = smul.addr %s178, 64
        %s183 = sadd.s32 %s181, %s182
        %s184 = smul.addr %s183, 8
        %s185 = scalar_lea.vmem %s0, %s184
        %p186 = pneg %p52
        %p187 = pneg %p49
        %p188 = scmp.lt.s32.totalorder %s22, 1
        %s189 = scalar_select %p188, %s22, 1
        %s190 = smul.addr %s189, 32
        %s191 = smul.addr %s190, 8
        %s192 = scalar_lea.vmem %s1, %s191
        %p193 = pneg %p78
        %p194 = pneg %p75
        %p195 = pneg %p99
        %p196 = pneg %p96
        %p197 = pneg %p125
        %p198 = pneg %p122
        %s199 = sand.u32 %s112, 1
        %s200 = scalar_lea.sflag [#allocation3], %s199
        %s201 = sand.u32 %s112, 1
        %s202 = smul.addr %s201, 128
        %s203 = scalar_lea.vmem [#allocation2], %s202
        %s204 = smul.u32 16, %s21
        %p205 = scmp.lt.s32.totalorder %s22, 1
        %s206 = scalar_select %p205, %s22, 1
        %p207 = scmp.lt.s32.totalorder %s204, 31
        %s208 = scalar_select %p207, %s204, 31
        %s209 = smul.addr %s208, 2
        %s210 = smul.addr %s206, 64
        %s211 = sadd.s32 %s209, %s210
        %s212 = smul.addr %s211, 8
        %s213 = scalar_lea.vmem %s0, %s212
        %s214 = smul.u32 16, %s21
        %p215 = scmp.lt.s32.totalorder %s22, 1
        %s216 = scalar_select %p215, %s22, 1
        %s217 = smul.addr %s216, 32
        %s218 = smul.addr %s217, 8
        %s219 = scalar_lea.vmem %s1, %s218
        %s220 = smul.u32 16, %s21
        %p221 = scmp.eq.s32.totalorder %s22, 0
        // Predicated region
        $region33: #{graph_convolution.1} parent=31 // pred_check
          %p222 = pneg %p221
        $region34: #{graph_convolution.1} parent=31 // pred_check_branch
          %224 = sbr.rel (%p222) target = $region36
        $region35: #{graph_convolution.1} parent=31 // pred_region
          %225 = vst [vmem:[%s203] sm:$0xff] 0.0
          %226 = vst [vmem:[%s203 + $0x8] sm:$0xff] 0.0
          %227 = vst [vmem:[%s203 + $0x10] sm:$0xff] 0.0
          %228 = vst [vmem:[%s203 + $0x18] sm:$0xff] 0.0
          %229 = vst [vmem:[%s203 + $0x20] sm:$0xff] 0.0
          %230 = vst [vmem:[%s203 + $0x28] sm:$0xff] 0.0
          %231 = vst [vmem:[%s203 + $0x30] sm:$0xff] 0.0
          %232 = vst [vmem:[%s203 + $0x38] sm:$0xff] 0.0
          %233 = vst [vmem:[%s203 + $0x40] sm:$0xff] 0.0
          %234 = vst [vmem:[%s203 + $0x48] sm:$0xff] 0.0
          %235 = vst [vmem:[%s203 + $0x50] sm:$0xff] 0.0
          %236 = vst [vmem:[%s203 + $0x58] sm:$0xff] 0.0
          %237 = vst [vmem:[%s203 + $0x60] sm:$0xff] 0.0
          %238 = vst [vmem:[%s203 + $0x68] sm:$0xff] 0.0
          %239 = vst [vmem:[%s203 + $0x70] sm:$0xff] 0.0
          %240 = vst [vmem:[%s203 + $0x78] sm:$0xff] 0.0
        $region36: #{graph_convolution.1} parent=31 // pred_fallthru
          _
        %v241 = vld [vmem:[%s203] sm:$0xff]
        %v242 = vld [vmem:[%s203 + $0x8] sm:$0xff]
        %v243 = vld [vmem:[%s203 + $0x10] sm:$0xff]
        %v244 = vld [vmem:[%s203 + $0x18] sm:$0xff]
        %v245 = vld [vmem:[%s203 + $0x20] sm:$0xff]
        %v246 = vld [vmem:[%s203 + $0x28] sm:$0xff]
        %v247 = vld [vmem:[%s203 + $0x30] sm:$0xff]
        %v248 = vld [vmem:[%s203 + $0x38] sm:$0xff]
        %v249 = vld [vmem:[%s203 + $0x40] sm:$0xff]
        %v250 = vld [vmem:[%s203 + $0x48] sm:$0xff]
        %v251 = vld [vmem:[%s203 + $0x50] sm:$0xff]
        %v252 = vld [vmem:[%s203 + $0x58] sm:$0xff]
        %v253 = vld [vmem:[%s203 + $0x60] sm:$0xff]
        %v254 = vld [vmem:[%s203 + $0x68] sm:$0xff]
        %v255 = vld [vmem:[%s203 + $0x70] sm:$0xff]
        %v256 = vld [vmem:[%s203 + $0x78] sm:$0xff]
        %v257 = vld [vmem:[%s213] sm:$0xff]
        %v258 = vld [vmem:[%s213 + $0x8] sm:$0xff]
        %v259 = vld [vmem:[%s213 + $0x10] sm:$0xff]
        %v260 = vld [vmem:[%s213 + $0x18] sm:$0xff]
        %v261 = vld [vmem:[%s213 + $0x20] sm:$0xff]
        %v262 = vld [vmem:[%s213 + $0x28] sm:$0xff]
        %v263 = vld [vmem:[%s213 + $0x30] sm:$0xff]
        %v264 = vld [vmem:[%s213 + $0x38] sm:$0xff]
        %v265 = vld [vmem:[%s213 + $0x40] sm:$0xff]
        %v266 = vld [vmem:[%s213 + $0x48] sm:$0xff]
        %v267 = vld [vmem:[%s213 + $0x50] sm:$0xff]
        %v268 = vld [vmem:[%s213 + $0x58] sm:$0xff]
        %v269 = vld [vmem:[%s213 + $0x60] sm:$0xff]
        %v270 = vld [vmem:[%s213 + $0x68] sm:$0xff]
        %v271 = vld [vmem:[%s213 + $0x70] sm:$0xff]
        %v272 = vld [vmem:[%s213 + $0x78] sm:$0xff]
        %v273 = vld [vmem:[%s213 + $0x80] sm:$0xff]
        %v274 = vld [vmem:[%s213 + $0x88] sm:$0xff]
        %v275 = vld [vmem:[%s213 + $0x90] sm:$0xff]
        %v276 = vld [vmem:[%s213 + $0x98] sm:$0xff]
        %v277 = vld [vmem:[%s213 + $0xa0] sm:$0xff]
        %v278 = vld [vmem:[%s213 + $0xa8] sm:$0xff]
        %v279 = vld [vmem:[%s213 + $0xb0] sm:$0xff]
        %v280 = vld [vmem:[%s213 + $0xb8] sm:$0xff]
        %v281 = vld [vmem:[%s213 + $0xc0] sm:$0xff]
        %v282 = vld [vmem:[%s213 + $0xc8] sm:$0xff]
        %v283 = vld [vmem:[%s213 + $0xd0] sm:$0xff]
        %v284 = vld [vmem:[%s213 + $0xd8] sm:$0xff]
        %v285 = vld [vmem:[%s213 + $0xe0] sm:$0xff]
        %v286 = vld [vmem:[%s213 + $0xe8] sm:$0xff]
        %v287 = vld [vmem:[%s213 + $0xf0] sm:$0xff]
        %v288 = vld [vmem:[%s213 + $0xf8] sm:$0xff]
        %v289 = vld [vmem:[%s219] sm:$0xff]
        %v290 = vld [vmem:[%s219 + $0x8] sm:$0xff]
        %v291 = vld [vmem:[%s219 + $0x10] sm:$0xff]
        %v292 = vld [vmem:[%s219 + $0x18] sm:$0xff]
        %v293 = vld [vmem:[%s219 + $0x20] sm:$0xff]
        %v294 = vld [vmem:[%s219 + $0x28] sm:$0xff]
        %v295 = vld [vmem:[%s219 + $0x30] sm:$0xff]
        %v296 = vld [vmem:[%s219 + $0x38] sm:$0xff]
        %v297 = vld [vmem:[%s219 + $0x40] sm:$0xff]
        %v298 = vld [vmem:[%s219 + $0x48] sm:$0xff]
        %v299 = vld [vmem:[%s219 + $0x50] sm:$0xff]
        %v300 = vld [vmem:[%s219 + $0x58] sm:$0xff]
        %v301 = vld [vmem:[%s219 + $0x60] sm:$0xff]
        %v302 = vld [vmem:[%s219 + $0x68] sm:$0xff]
        %v303 = vld [vmem:[%s219 + $0x70] sm:$0xff]
        %v304 = vld [vmem:[%s219 + $0x78] sm:$0xff]
        %v305 = vld [vmem:[%s219 + $0x80] sm:$0xff]
        %v306 = vld [vmem:[%s219 + $0x88] sm:$0xff]
        %v307 = vld [vmem:[%s219 + $0x90] sm:$0xff]
        %v308 = vld [vmem:[%s219 + $0x98] sm:$0xff]
        %v309 = vld [vmem:[%s219 + $0xa0] sm:$0xff]
        %v310 = vld [vmem:[%s219 + $0xa8] sm:$0xff]
        %v311 = vld [vmem:[%s219 + $0xb0] sm:$0xff]
        %v312 = vld [vmem:[%s219 + $0xb8] sm:$0xff]
        %v313 = vld [vmem:[%s219 + $0xc0] sm:$0xff]
        %v314 = vld [vmem:[%s219 + $0xc8] sm:$0xff]
        %v315 = vld [vmem:[%s219 + $0xd0] sm:$0xff]
        %v316 = vld [vmem:[%s219 + $0xd8] sm:$0xff]
        %v317 = vld [vmem:[%s219 + $0xe0] sm:$0xff]
        %v318 = vld [vmem:[%s219 + $0xe8] sm:$0xff]
        %v319 = vld [vmem:[%s219 + $0xf0] sm:$0xff]
        %v320 = vld [vmem:[%s219 + $0xf8] sm:$0xff]
        %321 = vmatprep.subr.mxu0 0.0
        %322 = vmatpush1.msra.mxu0 %v289
        %323 = vmatprep.subr.mxu0 0.0
        %324 = vmatpush1.msra.mxu0 %v290
        %325 = vmatprep.subr.mxu0 0.0
        %326 = vmatpush1.msra.mxu0 %v291
        %327 = vmatprep.subr.mxu0 0.0
        %328 = vmatpush1.msra.mxu0 %v292
        %329 = vmatprep.subr.mxu0 0.0
        %330 = vmatpush1.msra.mxu0 %v293
        %331 = vmatprep.subr.mxu0 0.0
        %332 = vmatpush1.msra.mxu0 %v294
        %333 = vmatprep.subr.mxu0 0.0
        %334 = vmatpush1.msra.mxu0 %v295
        %335 = vmatprep.subr.mxu0 0.0
        %336 = vmatpush1.msra.mxu0 %v296
        %337 = vmatprep.subr.mxu0 0.0
        %338 = vmatpush1.msra.mxu0 %v297
        %339 = vmatprep.subr.mxu0 0.0
        %340 = vmatpush1.msra.mxu0 %v298
        %341 = vmatprep.subr.mxu0 0.0
        %342 = vmatpush1.msra.mxu0 %v299
        %343 = vmatprep.subr.mxu0 0.0
        %344 = vmatpush1.msra.mxu0 %v300
        %345 = vmatprep.subr.mxu0 0.0
        %346 = vmatpush1.msra.mxu0 %v301
        %347 = vmatprep.subr.mxu0 0.0
        %348 = vmatpush1.msra.mxu0 %v302
        %349 = vmatprep.subr.mxu0 0.0
        %350 = vmatpush1.msra.mxu0 %v303
        %351 = vmatprep.subr.mxu0 0.0
        %352 = vmatpush1.msra.mxu0 %v304
        %353 = vmatprep.subr.mxu0 0.0
        %354 = vmatpush1.msra.mxu0 %v305
        %355 = vmatprep.subr.mxu0 0.0
        %356 = vmatpush1.msra.mxu0 %v306
        %357 = vmatprep.subr.mxu0 0.0
        %358 = vmatpush1.msra.mxu0 %v307
        %359 = vmatprep.subr.mxu0 0.0
        %360 = vmatpush1.msra.mxu0 %v308
        %361 = vmatprep.subr.mxu0 0.0
        %362 = vmatpush1.msra.mxu0 %v309
        %363 = vmatprep.subr.mxu0 0.0
        %364 = vmatpush1.msra.mxu0 %v310
        %365 = vmatprep.subr.mxu0 0.0
        %366 = vmatpush1.msra.mxu0 %v311
        %367 = vmatprep.subr.mxu0 0.0
        %368 = vmatpush1.msra.mxu0 %v312
        %369 = vmatprep.subr.mxu0 0.0
        %370 = vmatpush1.msra.mxu0 %v313
        %371 = vmatprep.subr.mxu0 0.0
        %372 = vmatpush1.msra.mxu0 %v314
        %373 = vmatprep.subr.mxu0 0.0
        %374 = vmatpush1.msra.mxu0 %v315
        %375 = vmatprep.subr.mxu0 0.0
        %376 = vmatpush1.msra.mxu0 %v316
        %377 = vmatprep.subr.mxu0 0.0
        %378 = vmatpush1.msra.mxu0 %v317
        %379 = vmatprep.subr.mxu0 0.0
        %380 = vmatpush1.msra.mxu0 %v318
        %381 = vmatprep.subr.mxu0 0.0
        %382 = vmatpush1.msra.mxu0 %v319
        %383 = vmatprep.subr.mxu0 0.0
        %384 = vmatpush1.msra.mxu0 %v320
        %385 = vmatprep.mubr.f32.mxu0 %v258
        %386 = vmatmul.mubr.f32.gmra.mrb[0].mxu0 %v257
        %v387 = vpop.f32.mrb[0].mxu0
        %v388 = vadd.f32 0.0, %v387
        %v389 = vpop.f32.mrb[0].mxu0
        %390 = vmatprep.mubr.f32.mxu0 %v260
        %391 = vmatmul.mubr.f32.gmra.mrb[0].mxu0 %v259
        %v392 = vpop.f32.mrb[0].mxu0
        %v393 = vadd.f32 0.0, %v392
        %v394 = vpop.f32.mrb[0].mxu0
        %395 = vmatprep.mubr.f32.mxu0 %v262
        %396 = vmatmul.mubr.f32.gmra.mrb[0].mxu0 %v261
        %v397 = vpop.f32.mrb[0].mxu0
        %v398 = vadd.f32 0.0, %v397
        %v399 = vpop.f32.mrb[0].mxu0
        %400 = vmatprep.mubr.f32.mxu0 %v264
        %401 = vmatmul.mubr.f32.gmra.mrb[0].mxu0 %v263
        %v402 = vpop.f32.mrb[0].mxu0
        %v403 = vadd.f32 0.0, %v402
        %v404 = vpop.f32.mrb[0].mxu0
        %405 = vmatprep.mubr.f32.mxu0 %v266
        %406 = vmatmul.mubr.f32.gmra.mrb[0].mxu0 %v265
        %v407 = vpop.f32.mrb[0].mxu0
        %v408 = vadd.f32 0.0, %v407
        %v409 = vpop.f32.mrb[0].mxu0
        %410 = vmatprep.mubr.f32.mxu0 %v268
        %411 = vmatmul.mubr.f32.gmra.mrb[0].mxu0 %v267
        %v412 = vpop.f32.mrb[0].mxu0
        %v413 = vadd.f32 0.0, %v412
        %v414 = vpop.f32.mrb[0].mxu0
        %415 = vmatprep.mubr.f32.mxu0 %v270
        %416 = vmatmul.mubr.f32.gmra.mrb[0].mxu0 %v269
        %v417 = vpop.f32.mrb[0].mxu0
        %v418 = vadd.f32 0.0, %v417
        %v419 = vpop.f32.mrb[0].mxu0
        %420 = vmatprep.mubr.f32.mxu0 %v272
        %421 = vmatmul.mubr.f32.gmra.mrb[0].mxu0 %v271
        %v422 = vpop.f32.mrb[0].mxu0
        %v423 = vadd.f32 0.0, %v422
        %v424 = vpop.f32.mrb[0].mxu0
        %425 = vmatprep.mubr.f32.mxu0 %v274
        %426 = vmatmul.mubr.f32.gmra.mrb[0].mxu0 %v273
        %v427 = vpop.f32.mrb[0].mxu0
        %v428 = vadd.f32 0.0, %v427
        %v429 = vpop.f32.mrb[0].mxu0
        %430 = vmatprep.mubr.f32.mxu0 %v276
        %431 = vmatmul.mubr.f32.gmra.mrb[0].mxu0 %v275
        %v432 = vpop.f32.mrb[0].mxu0
        %v433 = vadd.f32 0.0, %v432
        %v434 = vpop.f32.mrb[0].mxu0
        %435 = vmatprep.mubr.f32.mxu0 %v278
        %436 = vmatmul.mubr.f32.gmra.mrb[0].mxu0 %v277
        %v437 = vpop.f32.mrb[0].mxu0
        %v438 = vadd.f32 0.0, %v437
        %v439 = vpop.f32.mrb[0].mxu0
        %440 = vmatprep.mubr.f32.mxu0 %v280
        %441 = vmatmul.mubr.f32.gmra.mrb[0].mxu0 %v279
        %v442 = vpop.f32.mrb[0].mxu0
        %v443 = vadd.f32 0.0, %v442
        %v444 = vpop.f32.mrb[0].mxu0
        %445 = vmatprep.mubr.f32.mxu0 %v282
        %446 = vmatmul.mubr.f32.gmra.mrb[0].mxu0 %v281
        %v447 = vpop.f32.mrb[0].mxu0
        %v448 = vadd.f32 0.0, %v447
        %v449 = vpop.f32.mrb[0].mxu0
        %450 = vmatprep.mubr.f32.mxu0 %v284
        %451 = vmatmul.mubr.f32.gmra.mrb[0].mxu0 %v283
        %v452 = vpop.f32.mrb[0].mxu0
        %v453 = vadd.f32 0.0, %v452
        %v454 = vpop.f32.mrb[0].mxu0
        %455 = vmatprep.mubr.f32.mxu0 %v286
        %456 = vmatmul.mubr.f32.gmra.mrb[0].mxu0 %v285
        %v457 = vpop.f32.mrb[0].mxu0
        %v458 = vadd.f32 0.0, %v457
        %v459 = vpop.f32.mrb[0].mxu0
        %460 = vmatprep.mubr.f32.mxu0 %v288
        %461 = vmatmul.mubr.f32.gmra.mrb[0].mxu0 %v287
        %v462 = vpop.f32.mrb[0].mxu0
        %v463 = vadd.f32 0.0, %v462
        %v464 = vpop.f32.mrb[0].mxu0
        %465 = vdwg.mxu0
        %v466 = vadd.f32 %v241, %v388
        %v467 = vadd.f32 %v242, %v393
        %v468 = vadd.f32 %v243, %v398
        %v469 = vadd.f32 %v244, %v403
        %v470 = vadd.f32 %v245, %v408
        %v471 = vadd.f32 %v246, %v413
        %v472 = vadd.f32 %v247, %v418
        %v473 = vadd.f32 %v248, %v423
        %v474 = vadd.f32 %v249, %v428
        %v475 = vadd.f32 %v250, %v433
        %v476 = vadd.f32 %v251, %v438
        %v477 = vadd.f32 %v252, %v443
        %v478 = vadd.f32 %v253, %v448
        %v479 = vadd.f32 %v254, %v453
        %v480 = vadd.f32 %v255, %v458
        %v481 = vadd.f32 %v256, %v463
        %482 = vst [vmem:[%s203] sm:$0xff] %v466
        %483 = vst [vmem:[%s203 + $0x8] sm:$0xff] %v467
        %484 = vst [vmem:[%s203 + $0x10] sm:$0xff] %v468
        %485 = vst [vmem:[%s203 + $0x18] sm:$0xff] %v469
        %486 = vst [vmem:[%s203 + $0x20] sm:$0xff] %v470
        %487 = vst [vmem:[%s203 + $0x28] sm:$0xff] %v471
        %488 = vst [vmem:[%s203 + $0x30] sm:$0xff] %v472
        %489 = vst [vmem:[%s203 + $0x38] sm:$0xff] %v473
        %490 = vst [vmem:[%s203 + $0x40] sm:$0xff] %v474
        %491 = vst [vmem:[%s203 + $0x48] sm:$0xff] %v475
        %492 = vst [vmem:[%s203 + $0x50] sm:$0xff] %v476
        %493 = vst [vmem:[%s203 + $0x58] sm:$0xff] %v477
        %494 = vst [vmem:[%s203 + $0x60] sm:$0xff] %v478
        %495 = vst [vmem:[%s203 + $0x68] sm:$0xff] %v479
        %496 = vst [vmem:[%s203 + $0x70] sm:$0xff] %v480
        %497 = vst [vmem:[%s203 + $0x78] sm:$0xff] %v481
        %p498 = scmp.eq.s32.totalorder %s22, 1
        // Predicated region
        $region37: #{graph_convolution.1} parent=31 // pred_check
          %p499 = pneg %p498
        $region38: #{graph_convolution.1} parent=31 // pred_check_branch
          %501 = sbr.rel (%p499) target = $region40
        $region39: #{graph_convolution.1} parent=31 // pred_region
          %v502 = vld [vmem:[%s203] sm:$0xff]
          %v503 = vld [vmem:[%s203 + $0x8] sm:$0xff]
          %v504 = vld [vmem:[%s203 + $0x10] sm:$0xff]
          %v505 = vld [vmem:[%s203 + $0x18] sm:$0xff]
          %v506 = vld [vmem:[%s203 + $0x20] sm:$0xff]
          %v507 = vld [vmem:[%s203 + $0x28] sm:$0xff]
          %v508 = vld [vmem:[%s203 + $0x30] sm:$0xff]
          %v509 = vld [vmem:[%s203 + $0x38] sm:$0xff]
          %v510 = vld [vmem:[%s203 + $0x40] sm:$0xff]
          %v511 = vld [vmem:[%s203 + $0x48] sm:$0xff]
          %v512 = vld [vmem:[%s203 + $0x50] sm:$0xff]
          %v513 = vld [vmem:[%s203 + $0x58] sm:$0xff]
          %v514 = vld [vmem:[%s203 + $0x60] sm:$0xff]
          %v515 = vld [vmem:[%s203 + $0x68] sm:$0xff]
          %v516 = vld [vmem:[%s203 + $0x70] sm:$0xff]
          %v517 = vld [vmem:[%s203 + $0x78] sm:$0xff]
          %v518 = vmul.f32 %v502, 0.5
          %v519 = vmul.f32 %v503, 0.5
          %v520 = vmul.f32 %v504, 0.5
          %v521 = vmul.f32 %v505, 0.5
          %v522 = vmul.f32 %v506, 0.5
          %v523 = vmul.f32 %v507, 0.5
          %v524 = vmul.f32 %v508, 0.5
          %v525 = vmul.f32 %v509, 0.5
          %v526 = vmul.f32 %v510, 0.5
          %v527 = vmul.f32 %v511, 0.5
          %v528 = vmul.f32 %v512, 0.5
          %v529 = vmul.f32 %v513, 0.5
          %v530 = vmul.f32 %v514, 0.5
          %v531 = vmul.f32 %v515, 0.5
          %v532 = vmul.f32 %v516, 0.5
          %v533 = vmul.f32 %v517, 0.5
          %v534 = vld [vmem:[%s2] sm:$0x1]
          %v536 = vlaneseq
          %v537 = vshrl.u32 %v536, 7
          %v538 = vsub.s32 0, %v537
          %v539 = vrot.slane %v534, %v538
          %v541 = vadd.f32 %v518, %v539
          %v542 = vadd.f32 %v519, %v539
          %v543 = vadd.f32 %v520, %v539
          %v544 = vadd.f32 %v521, %v539
          %v545 = vadd.f32 %v522, %v539
          %v546 = vadd.f32 %v523, %v539
          %v547 = vadd.f32 %v524, %v539
          %v548 = vadd.f32 %v525, %v539
          %v549 = vadd.f32 %v526, %v539
          %v550 = vadd.f32 %v527, %v539
          %v551 = vadd.f32 %v528, %v539
          %v552 = vadd.f32 %v529, %v539
          %v553 = vadd.f32 %v530, %v539
          %v554 = vadd.f32 %v531, %v539
          %v555 = vadd.f32 %v532, %v539
          %v556 = vadd.f32 %v533, %v539
          %557 = vst [vmem:[%s203] sm:$0xff] %v541
          %558 = vst [vmem:[%s203 + $0x8] sm:$0xff] %v542
          %559 = vst [vmem:[%s203 + $0x10] sm:$0xff] %v543
          %560 = vst [vmem:[%s203 + $0x18] sm:$0xff] %v544
          %561 = vst [vmem:[%s203 + $0x20] sm:$0xff] %v545
          %562 = vst [vmem:[%s203 + $0x28] sm:$0xff] %v546
          %563 = vst [vmem:[%s203 + $0x30] sm:$0xff] %v547
          %564 = vst [vmem:[%s203 + $0x38] sm:$0xff] %v548
          %565 = vst [vmem:[%s203 + $0x40] sm:$0xff] %v549
          %566 = vst [vmem:[%s203 + $0x48] sm:$0xff] %v550
          %567 = vst [vmem:[%s203 + $0x50] sm:$0xff] %v551
          %568 = vst [vmem:[%s203 + $0x58] sm:$0xff] %v552
          %569 = vst [vmem:[%s203 + $0x60] sm:$0xff] %v553
          %570 = vst [vmem:[%s203 + $0x68] sm:$0xff] %v554
          %571 = vst [vmem:[%s203 + $0x70] sm:$0xff] %v555
          %572 = vst [vmem:[%s203 + $0x78] sm:$0xff] %v556
        $region40: #{graph_convolution.1} parent=31 // pred_fallthru
          _
        %s573 = sand.u32 %s112, 1
        %s574 = scalar_lea.sflag [#allocation3], %s573
        %s575 = sand.u32 %s112, 1
        %s576 = smul.addr %s575, 128
        %s577 = scalar_lea.vmem [#allocation2], %s576
        // Predicated region
        $region41: #{graph_convolution.1} parent=31 // pred_check
          %p578 = pneg %p122
        $region42: #{graph_convolution.1} parent=31 // pred_check_branch
          %580 = sbr.rel (%p578) target = $region44
        $region43: #{graph_convolution.1} parent=31 // pred_region
          %s581 = smul.u32 16, %s21
          %s583 = ssub.s32 2048, 2048
          %584 = vsyncadd %s574, %s583
          %s585 = smul.addr %s581, 128
          %s586 = scalar_lea.hbm %s3, %s585
          %s587 = sshll.u32 %s577, 4
          %s588 = int_to_ptr.vmem [resolvable:$true] %s587
          %593 = dma.vmem_to_hbm [thread:$0]  %s588, 2048, %s586, %s574, 128, 128, 8
        $region44: #{graph_convolution.1} parent=31 // pred_fallthru
          _
      $region32: #{graph_convolution.1} parent=5 // pred_fallthru
        _
      %p594 = scmp.le.s32.totalorder 2, %s12
      // Predicated region
      $region45: #{graph_convolution.1} parent=5 // pred_check
        %p595 = pneg %p594
      $region46: #{graph_convolution.1} parent=5 // pred_check_branch
        %597 = sbr.rel (%p595) target = $region48
      $region47: #{graph_convolution.1} parent=5 // pred_region
        %s598 = ssub.s32 %s12, 2
        // Predicated region
        $region49: #{graph_convolution.1} parent=47 // pred_check
          %p599 = pneg %p128
        $region50: #{graph_convolution.1} parent=47 // pred_check_branch
          %601 = sbr.rel (%p599) target = $region52
        $region51: #{graph_convolution.1} parent=47 // pred_region
          %s602 = sand.u32 %s113, 1
          %s603 = scalar_lea.sflag [#allocation3], %s602
          %s604 = sand.u32 %s113, 1
          %s605 = smul.addr %s604, 128
          %s606 = scalar_lea.vmem [#allocation2], %s605
          %607 = dma.done %s603, 2048
        $region52: #{graph_convolution.1} parent=47 // pred_fallthru
          _
      $region48: #{graph_convolution.1} parent=5 // pred_fallthru
        _
    $region6: #{graph_convolution.1} parent=1 // loop_footer
      %s16 = sadd.s32 1, %s12
    $region7: #{graph_convolution.1} parent=1 // loop_footer_branch
      %11 = sbr.rel target = $region3
    $region8: #{graph_convolution.1} parent=1 // loop_exit
      _
    %608 = vsyncpa [#allocation3], 1
    %s609 = scalar_lea.sflag [#allocation3], 1
    %610 = vsyncpa %s609, 1

</llo_original>
